<compile_context>
chip_gen: v7x
topology: tpu7x:2x2x1
jax: 0.10.0
libtpu: 0.0.40
codegen_flags: <defaults>
</compile_context>

<pallas_src>
import functools
import math

import jax
import jax.numpy as jnp
from jax.experimental import pallas as pl
from jax.experimental.pallas import tpu as pltpu


def make_sinusoidal_table(max_len: int, embed_dim: int, dtype=jnp.float32):
    """Same buffer as the torch __init__ (even cols sin, odd cols cos).

    Built host-side with jnp: it is a registered buffer (init-time state), not
    forward compute.  Pass dtype=jnp.bfloat16 to halve the HBM/VMEM footprint
    of the resident table (useful on v7x's 64 MiB VMEM); the gather stays exact
    because the one-hot weights are 0/1.
    """
    assert embed_dim % 2 == 0, "embed_dim must be even (same constraint as the torch code)"
    position = jnp.arange(max_len, dtype=jnp.float32)[:, None]                  # (L, 1)
    div_term = jnp.exp(
        jnp.arange(0, embed_dim, 2, dtype=jnp.float32) * (-math.log(10000.0) / embed_dim)
    )                                                                            # (D/2,)
    angles = position * div_term                                                 # (L, D/2)
    pe = jnp.stack([jnp.sin(angles), jnp.cos(angles)], axis=-1).reshape(max_len, embed_dim)
    return pe.astype(dtype)


def _onehot_gather_kernel(idx_ref, pe_ref, o_ref):
    """One grid step: gather `block_rows` rows of pe via a one-hot MXU matmul.

    idx_ref : VMEM (1, block_rows, 1) int32  -- this block's flat time indices
    pe_ref  : VMEM (max_len, D)              -- full table, resident across steps
    o_ref   : VMEM (block_rows, D)           -- dense output tile (single store)
    """
    block_rows = o_ref.shape[0]
    max_len = pe_ref.shape[0]

    idx = idx_ref[0]                                   # (block_rows, 1): one index per sublane
    # TODO(synk): torch raises IndexError for indices >= max_len; inside a kernel we
    # cannot raise, so negatives wrap (torch semantics) and positive OOB rows come out zero.
    idx = jnp.where(idx < 0, idx + max_len, idx)

    table_row = jax.lax.broadcasted_iota(jnp.int32, (block_rows, max_len), 1)
    onehot = (table_row == idx).astype(pe_ref.dtype)   # exact 0/1 weights

    rows = jnp.dot(onehot, pe_ref[...], preferred_element_type=jnp.float32)
    o_ref[...] = rows.astype(o_ref.dtype)


def _round_up(x: int, m: int) -> int:
    return ((x + m - 1) // m) * m


@functools.partial(jax.jit, static_argnames=("block_rows", "min_kernel_rows"))
def positional_encoding_lookup(time_index, pe, *, block_rows: int = 128,
                               min_kernel_rows: int = 0):
    """pe[time_index] for an integer `time_index` of any shape -> (*shape, embed_dim)."""
    orig_shape = time_index.shape
    max_len, embed_dim = pe.shape

    idx = time_index.reshape(-1).astype(jnp.int32)
    num_rows = idx.shape[0]

    if num_rows < min_kernel_rows:
        # Tiny-M fast path: a plain XLA gather beats the pallas_call fixed cost.
        safe = jnp.where(idx < 0, idx + max_len, idx)
        return jnp.take(pe, safe, axis=0).reshape(*orig_shape, embed_dim)

    # Minimum sublane tile for the table dtype (f32 -> 8, bf16 -> 16, int8/fp8 -> 32).
    sub = {4: 8, 2: 16, 1: 32}.get(jnp.dtype(pe.dtype).itemsize, 8)
    block_rows = min(block_rows, _round_up(num_rows, sub))
    block_rows = max(sub, _round_up(block_rows, sub))

    num_blocks = pl.cdiv(num_rows, block_rows)
    rows_padded = num_blocks * block_rows
    if rows_padded != num_rows:
        # Pad with index 0 (a valid row); padded output rows are sliced away below.
        idx = jnp.pad(idx, (0, rows_padded - num_rows))
    idx3 = idx.reshape(num_blocks, block_rows, 1)        # one index per sublane in-kernel

    out = pl.pallas_call(
        _onehot_gather_kernel,
        out_shape=jax.ShapeDtypeStruct((rows_padded, embed_dim), pe.dtype),
        grid=(num_blocks,),
        in_specs=[
            # Per-step index block.
            pl.BlockSpec((1, block_rows, 1), lambda i: (i, 0, 0)),
            # Full table, constant block index -> DMA'd into VMEM once, stays resident.
            # (For very large tables on v7x's 64 MiB VMEM: store the table in bf16 or
            #  tile it along D with a second grid axis.)
            pl.BlockSpec((max_len, embed_dim), lambda i: (0, 0)),
        ],
        out_specs=pl.BlockSpec((block_rows, embed_dim), lambda i: (i, 0)),
        compiler_params=pltpu.CompilerParams(
            # Independent row blocks -> megacore-sharded on v7x; no-op on v5e/v6e.
            dimension_semantics=("parallel",),
        ),
    )(idx3, pe)

    return out[:num_rows].reshape(*orig_shape, embed_dim)


class PositionalEncoding:
    """Functional mirror of the torch module (buffer + forward gather)."""

    def __init__(self, embed_dim: int, max_len: int, dtype=jnp.float32,
                 block_rows: int = 128, min_kernel_rows: int = 0):
        self.pe = make_sinusoidal_table(max_len, embed_dim, dtype=dtype)
        self.block_rows = block_rows
        self.min_kernel_rows = min_kernel_rows

    def __call__(self, time_index):
        return positional_encoding_lookup(
            time_index, self.pe,
            block_rows=self.block_rows, min_kernel_rows=self.min_kernel_rows)


if __name__ == "__main__":
    key = jax.random.PRNGKey(0)
    k1, k2 = jax.random.split(key)

    # Small but representative shapes: lane-aligned embed dim (the real ViT uses
    # multiples of 128), short positional-table length.
    embed_dim, max_len = 128, 96
    module = PositionalEncoding(embed_dim, max_len)

    # Case 1: (B, T) = (2, 8) -> 16 lookups, single grid block.
    t1 = jax.random.randint(k1, (2, 8), 0, max_len)
    y1 = module(t1)
    jax.block_until_ready(y1)
    ref1 = module.pe[t1]          # pure-JAX reference == torch's self.pe[time_index]
    assert y1.shape == (2, 8, embed_dim)
    assert jnp.allclose(y1, ref1, atol=5e-3, rtol=0.0)

    # Case 2: 150 lookups -> padding + 2 grid blocks (megacore-parallel on v7x).
    t2 = jax.random.randint(k2, (3, 50), 0, max_len)
    y2 = module(t2)
    jax.block_until_ready(y2)
    assert jnp.allclose(y2, module.pe[t2], atol=5e-3, rtol=0.0)

    # Tiny-M XLA fast path (kernel bypass) stays consistent with the kernel output.
    y3 = positional_encoding_lookup(t1, module.pe, min_kernel_rows=64)
    jax.block_until_ready(y3)
    assert jnp.allclose(y3, ref1, atol=5e-3, rtol=0.0)

    print("KERNEL_OK")
</pallas_src>

<mosaic_0001>
module attributes {stable_mosaic.version = 11 : i64} {
  func.func @_onehot_gather_kernel(%arg0: i32, %arg1: memref<1x16x1xi32, #tpu.memory_space<vmem>>, %arg2: memref<96x128xf32, #tpu.memory_space<vmem>>, %arg3: memref<16x128xf32, #tpu.memory_space<vmem>>) attributes {dimension_semantics = [#tpu.dimension_semantics<parallel>], iteration_bounds = array<i64: 1>, scalar_prefetch = 0 : i64, scratch_operands = 0 : i64, tpu.core_type = #tpu.core_type<tc>, window_params = [{transform_indices = @transform_0, window_bounds = array<i64: 1, 16, 1>}, {pipeline_mode = #tpu.pipeline_mode<synchronous>, transform_indices = @transform_1, window_bounds = array<i64: 96, 128>}, {transform_indices = @transform_2, window_bounds = array<i64: 16, 128>}]} {
    %c0 = arith.constant 0 : index
    %c0_0 = arith.constant 0 : index
    %c0_1 = arith.constant 0 : index
    %0 = vector.load %arg1[%c0, %c0_0, %c0_1] : memref<1x16x1xi32, #tpu.memory_space<vmem>>, vector<1x16x1xi32>
    %1 = vector.shape_cast %0 : vector<1x16x1xi32> to vector<16x1xi32>
    %c0_i32 = arith.constant 0 : i32
    %2 = vector.broadcast %c0_i32 : i32 to vector<16x1xi32>
    %3 = arith.cmpi slt, %1, %2 : vector<16x1xi32>
    %c96_i32 = arith.constant 96 : i32
    %4 = vector.broadcast %c96_i32 : i32 to vector<16x1xi32>
    %5 = arith.addi %1, %4 : vector<16x1xi32>
    %6 = arith.select %3, %5, %1 : vector<16x1xi1>, vector<16x1xi32>
    %7 = tpu.iota {dimensions = array<i32: 1>} : vector<16x96xi32>
    %8 = vector.broadcast %6 : vector<16x1xi32> to vector<16x96xi32>
    %9 = arith.cmpi eq, %7, %8 : vector<16x96xi32>
    %10 = arith.extui %9 : vector<16x96xi1> to vector<16x96xi32>
    %11 = arith.sitofp %10 : vector<16x96xi32> to vector<16x96xf32>
    %c0_2 = arith.constant 0 : index
    %c0_3 = arith.constant 0 : index
    %12 = vector.load %arg2[%c0_2, %c0_3] : memref<96x128xf32, #tpu.memory_space<vmem>>, vector<96x128xf32>
    %cst = arith.constant dense<0.000000e+00> : vector<16x128xf32>
    %13 = tpu.matmul %11, %12, %cst {dimension_numbers = #tpu.dot_dimension_numbers<[1], [0], [0], [1], [0, 0, 1, 1], [], []>} : vector<16x96xf32>, vector<96x128xf32>, vector<16x128xf32> -> vector<16x128xf32>
    %c0_4 = arith.constant 0 : index
    %c0_5 = arith.constant 0 : index
    %14 = vector.load %arg3[%c0_4, %c0_5] : memref<16x128xf32, #tpu.memory_space<vmem>>, vector<16x128xf32>
    tpu.vector_store %arg3[%c0_4, %c0_5], %13 {strides = array<i32>} : memref<16x128xf32, #tpu.memory_space<vmem>>, vector<16x128xf32>,
    return
  }
  func.func @transform_0(%arg0: i32) -> (i32, i32, i32) {
    %c0_i32 = arith.constant 0 : i32
    %c0_i32_0 = arith.constant 0 : i32
    %c0_i32_1 = arith.constant 0 : i32
    return %arg0, %c0_i32, %c0_i32_0 : i32, i32, i32
  }
  func.func @transform_1(%arg0: i32) -> (i32, i32) {
    %c0_i32 = arith.constant 0 : i32
    %c0_i32_0 = arith.constant 0 : i32
    %c0_i32_1 = arith.constant 0 : i32
    return %c0_i32, %c0_i32_0 : i32, i32
  }
  func.func @transform_2(%arg0: i32) -> (i32, i32) {
    %c0_i32 = arith.constant 0 : i32
    %c0_i32_0 = arith.constant 0 : i32
    return %arg0, %c0_i32 : i32, i32
  }
}

</mosaic_0001>

<llo_original>
// kernel: positional_encoding_lookup.1
$region0: #{positional_encoding_lookup.1}
  #allocation0 [shape = 'u32[]', space=smem, size = 0x4, offset = 0x4, fixed_abs, tag = 'smem constant byte address 0x4 - core index']
  #allocation1 [shape = 'u32[144,128]{1,0:T(1,128)}', space=vmem, size = 0x12000, scoped, tag = 'internal scratch']
  %s0 = inlined_call_operand.vmem [shape: s32[1,16,1], index: 0, kind: input, shape index: {}]
  %s1 = inlined_call_operand.hbm [shape: f32[96,128], index: 1, kind: input, shape index: {}]
  %s2 = inlined_call_operand.hbm [shape: f32[16,128], index: 2, kind: output, shape index: {}]
  %s3 = sld [smem:[#allocation0]]
  $region22: #{positional_encoding_lookup.1} parent=0
    _
  %s5 = ssub.s32 1, %s3
  %s6 = scalar_select 0, %s5, %s3
  $region1: #{positional_encoding_lookup.1} parent=0
    #allocation2 [shape = 'u8[49152]{0}', space=vmem, size = 0xc000, scoped, tag = 'input window, operand 1, single buffered']
    #allocation3 [shape = 's32[1]{0}', space=sflag, size = 0x4, scoped, tag = 'scoped memory for positional_encoding_lookup.1']
    #allocation4 [shape = 's32[1]{0}', space=sflag, size = 0x4, scoped, tag = 'scoped memory for positional_encoding_lookup.1']
    #allocation5 [shape = 'u8[8192]{0}', space=vmem, size = 0x2000, scoped, tag = 'output window, operand 0, single buffered']
    %7 = vsyncpa [#allocation3], 0
    %8 = vsyncpa [#allocation4], 0
    // Predicated region
    $region2: #{positional_encoding_lookup.1} parent=1 // pred_check
      _
    $region3: #{positional_encoding_lookup.1} parent=1 // pred_check_branch
      %10 = sbr.rel (0) target = $region5
    $region4: #{positional_encoding_lookup.1} parent=1 // pred_region
      _
    $region5: #{positional_encoding_lookup.1} parent=1 // pred_fallthru
      _
    // Predicated region
    $region6: #{positional_encoding_lookup.1} parent=1 // pred_check
      _
    $region7: #{positional_encoding_lookup.1} parent=1 // pred_check_branch
      %12 = sbr.rel (0) target = $region9
    $region8: #{positional_encoding_lookup.1} parent=1 // pred_region
      %s14 = ssub.s32 1536, 1536
      %15 = vsyncadd [#allocation3], %s14
      %s16 = sshll.u32 [#allocation2], 4
      %s17 = int_to_ptr.vmem [resolvable:$true] %s16
      %22 = dma.hbm_to_vmem [thread:$0]  %s1, 1536, %s17, [#allocation3], 128, 128, 8
    $region9: #{positional_encoding_lookup.1} parent=1 // pred_fallthru
      _
    // Predicated region
    $region10: #{positional_encoding_lookup.1} parent=1 // pred_check
      _
    $region11: #{positional_encoding_lookup.1} parent=1 // pred_check_branch
      %24 = sbr.rel (0) target = $region13
    $region12: #{positional_encoding_lookup.1} parent=1 // pred_region
      %25 = dma.done [#allocation3], 1536
    $region13: #{positional_encoding_lookup.1} parent=1 // pred_fallthru
      _
    %v26 = vld [vmem:[%s0] sm:$0xff]
    %v27 = vld [vmem:[%s0 + $0x8] sm:$0xff]
    %vm28 = vcmp.lt.s32.totalorder %v26, 0
    %vm29 = vcmp.lt.s32.totalorder %v27, 0
    %v30 = vadd.s32 %v26, 96
    %v31 = vadd.s32 %v27, 96
    %v32 = vsel %vm28, %v30, %v26
    %v33 = vsel %vm29, %v31, %v27
    %v34 = vlaneseq
    %v35 = vand.u32 %v34, 127
    %36 = vset.pattern.permute.xlu0 0
    %37 = vperm.xlu0 %36, %v32
    %v38 = vpop.permute.xlu0 %37
    %39 = vset.pattern.permute.xlu0 0
    %40 = vperm.xlu0 %39, %v33
    %v41 = vpop.permute.xlu0 %40
    %vm42 = vcmp.eq.s32.totalorder %v35, %v38
    %vm43 = vcmp.eq.s32.totalorder %v35, %v41
    %v44 = vsel %vm42, 1, 0
    %v45 = vsel %vm43, 1, 0
    %v46 = vcvt.s32.f32 %v44
    %v47 = vcvt.s32.f32 %v45
    %v48 = vld [vmem:[#allocation2] sm:$0xff]
    %v49 = vld [vmem:[#allocation2 + $0x8] sm:$0xff]
    %v50 = vld [vmem:[#allocation2 + $0x10] sm:$0xff]
    %v51 = vld [vmem:[#allocation2 + $0x18] sm:$0xff]
    %v52 = vld [vmem:[#allocation2 + $0x20] sm:$0xff]
    %v53 = vld [vmem:[#allocation2 + $0x28] sm:$0xff]
    %v54 = vld [vmem:[#allocation2 + $0x30] sm:$0xff]
    %v55 = vld [vmem:[#allocation2 + $0x38] sm:$0xff]
    %v56 = vld [vmem:[#allocation2 + $0x40] sm:$0xff]
    %v57 = vld [vmem:[#allocation2 + $0x48] sm:$0xff]
    %v58 = vld [vmem:[#allocation2 + $0x50] sm:$0xff]
    %v59 = vld [vmem:[#allocation2 + $0x58] sm:$0xff]
    %vm60 = vcmask 785408
    %v62 = vsel %vm60, %v46, 0
    %v65 = vsel %vm60, %v47, 0
    %67 = vmatprep.subr.mxu0 0.0
    %68 = vmatpush1.msra.mxu0 %v48
    %69 = vmatprep.subr.mxu0 0.0
    %70 = vmatpush1.msra.mxu0 %v49
    %71 = vmatprep.subr.mxu0 0.0
    %72 = vmatpush1.msra.mxu0 %v50
    %73 = vmatprep.subr.mxu0 0.0
    %74 = vmatpush1.msra.mxu0 %v51
    %75 = vmatprep.subr.mxu0 0.0
    %76 = vmatpush1.msra.mxu0 %v52
    %77 = vmatprep.subr.mxu0 0.0
    %78 = vmatpush1.msra.mxu0 %v53
    %79 = vmatprep.subr.mxu0 0.0
    %80 = vmatpush1.msra.mxu0 %v54
    %81 = vmatprep.subr.mxu0 0.0
    %82 = vmatpush1.msra.mxu0 %v55
    %83 = vmatprep.subr.mxu0 0.0
    %84 = vmatpush1.msra.mxu0 %v56
    %85 = vmatprep.subr.mxu0 0.0
    %86 = vmatpush1.msra.mxu0 %v57
    %87 = vmatprep.subr.mxu0 0.0
    %88 = vmatpush1.msra.mxu0 %v58
    %89 = vmatprep.subr.mxu0 0.0
    %90 = vmatpush1.msra.mxu0 %v59
    %91 = vmatprep.subr.mxu0 0.0
    %92 = vmatpush1.msra.mxu0 0.0
    %93 = vmatprep.subr.mxu0 0.0
    %94 = vmatpush1.msra.mxu0 0.0
    %95 = vmatprep.subr.mxu0 0.0
    %96 = vmatpush1.msra.mxu0 0.0
    %97 = vmatprep.subr.mxu0 0.0
    %98 = vmatpush1.msra.mxu0 0.0
    %99 = vmatprep.subr.mxu0 0.0
    %100 = vmatpush1.msra.mxu0 0.0
    %101 = vmatprep.subr.mxu0 0.0
    %102 = vmatpush1.msra.mxu0 0.0
    %103 = vmatprep.subr.mxu0 0.0
    %104 = vmatpush1.msra.mxu0 0.0
    %105 = vmatprep.subr.mxu0 0.0
    %106 = vmatpush1.msra.mxu0 0.0
    %107 = vmatprep.subr.mxu0 0.0
    %108 = vmatpush1.msra.mxu0 0.0
    %109 = vmatprep.subr.mxu0 0.0
    %110 = vmatpush1.msra.mxu0 0.0
    %111 = vmatprep.subr.mxu0 0.0
    %112 = vmatpush1.msra.mxu0 0.0
    %113 = vmatprep.subr.mxu0 0.0
    %114 = vmatpush1.msra.mxu0 0.0
    %115 = vmatprep.subr.mxu0 0.0
    %116 = vmatpush1.msra.mxu0 0.0
    %117 = vmatprep.subr.mxu0 0.0
    %118 = vmatpush1.msra.mxu0 0.0
    %119 = vmatprep.subr.mxu0 0.0
    %120 = vmatpush1.msra.mxu0 0.0
    %121 = vmatprep.subr.mxu0 0.0
    %122 = vmatpush1.msra.mxu0 0.0
    %123 = vmatprep.subr.mxu0 0.0
    %124 = vmatpush1.msra.mxu0 0.0
    %125 = vmatprep.subr.mxu0 0.0
    %126 = vmatpush1.msra.mxu0 0.0
    %127 = vmatprep.subr.mxu0 0.0
    %128 = vmatpush1.msra.mxu0 0.0
    %129 = vmatprep.subr.mxu0 0.0
    %130 = vmatpush1.msra.mxu0 0.0
    %131 = vmatprep.mubr.f32.mxu0 0.0
    %132 = vmatmul.mubr.f32.gmra.mrb[0].mxu0 %v62
    %v133 = vpop.f32.mrb[0].mxu0
    %v134 = vadd.f32 0.0, %v133
    %v135 = vpop.f32.mrb[0].mxu0
    %136 = vmatprep.mubr.f32.mxu0 0.0
    %137 = vmatmul.mubr.f32.gmra.mrb[0].mxu0 %v65
    %v138 = vpop.f32.mrb[0].mxu0
    %v139 = vadd.f32 0.0, %v138
    %v140 = vpop.f32.mrb[0].mxu0
    %141 = vdwg.mxu0
    %142 = vst [vmem:[#allocation5] sm:$0xff] %v134
    %143 = vst [vmem:[#allocation5 + $0x8] sm:$0xff] %v139
    // Predicated region
    $region14: #{positional_encoding_lookup.1} parent=1 // pred_check
      _
    $region15: #{positional_encoding_lookup.1} parent=1 // pred_check_branch
      %145 = sbr.rel (0) target = $region17
    $region16: #{positional_encoding_lookup.1} parent=1 // pred_region
      %s147 = ssub.s32 256, 256
      %148 = vsyncadd [#allocation4], %s147
      %s149 = sshll.u32 [#allocation5], 4
      %s150 = int_to_ptr.vmem [resolvable:$true] %s149
      %155 = dma.vmem_to_hbm [thread:$0]  %s150, 256, %s2, [#allocation4], 128, 128, 8
    $region17: #{positional_encoding_lookup.1} parent=1 // pred_fallthru
      _
    // Predicated region
    $region18: #{positional_encoding_lookup.1} parent=1 // pred_check
      _
    $region19: #{positional_encoding_lookup.1} parent=1 // pred_check_branch
      %157 = sbr.rel (0) target = $region21
    $region20: #{positional_encoding_lookup.1} parent=1 // pred_region
      %158 = dma.done [#allocation4], 256
    $region21: #{positional_encoding_lookup.1} parent=1 // pred_fallthru
      _
    %159 = vsyncpa [#allocation3], 1
    %160 = vsyncpa [#allocation4], 1

</llo_original>
